<compile_context>
chip_gen: v5e
topology: v5e:2x2
jax: 0.10.0
libtpu: 0.0.40
codegen_flags: <defaults>
</compile_context>

<pallas_src>
import jax
import jax.numpy as jnp
from jax.experimental import pallas as pl
from jax.experimental.pallas import tpu as pltpu

LANE = 128  # vreg lane width (last dim)


def _round_up(x: int, m: int) -> int:
    return (x + m - 1) // m * m


def _cdiv(a: int, b: int) -> int:
    return -(-a // b)


def _pad_to(arr, target_shape):
    pads = [(0, t - s) for s, t in zip(arr.shape, target_shape)]
    if any(p[1] for p in pads):
        return jnp.pad(arr, pads)
    return arr


def _chip_params():
    """Return (per-core VMEM capacity in bytes, TensorCores per chip)."""
    vmem_cap = 64 * 1024 * 1024  # conservative default (v7x floor)
    num_tc = 1
    kind = ""
    try:
        kind = jax.devices()[0].device_kind.lower()
    except Exception:
        pass
    if "v7" in kind or "7x" in kind:
        vmem_cap, num_tc = 64 * 1024 * 1024, 2
    elif "v5" in kind or "v6" in kind:
        vmem_cap, num_tc = 128 * 1024 * 1024, 1
    elif "v4" in kind or "v3" in kind:
        vmem_cap, num_tc = 128 * 1024 * 1024, 2
    try:
        info = pltpu.get_tpu_info()
        vmem_cap = int(getattr(info, "vmem_capacity_bytes", vmem_cap))
    except Exception:
        pass
    return vmem_cap, num_tc


def _pick_batch_tile(B: int, sub: int, num_tc: int, bm_cap: int):
    """Grid-count-first batch tiling (near-equal tiles, minimal zero-row pad)."""
    b_aligned = _round_up(B, sub)
    min_tiles = 1
    if num_tc > 1:
        if b_aligned >= num_tc * 2 * 256:
            # >= 2 steps per TensorCore (pipeline overlap) while keeping bm >= 256.
            min_tiles = num_tc * 2
        elif b_aligned >= num_tc * sub:
            # At least give every core one step of work.
            min_tiles = num_tc
    bm_cap = max(sub, bm_cap)
    n_tiles = max(min_tiles, _cdiv(b_aligned, bm_cap))
    bm = min(_round_up(_cdiv(b_aligned, n_tiles), sub), bm_cap)
    grid_n = _cdiv(B, bm)
    b_p = grid_n * bm
    return bm, grid_n, b_p


def _make_kernel(use_bf16: bool):
    def mlp_kernel(x_ref, w1_ref, b1_ref, w2_ref, b2_ref, out_ref):
        x = x_ref[...]
        w1 = w1_ref[...]
        if use_bf16:
            x = x.astype(jnp.bfloat16)
            w1 = w1.astype(jnp.bfloat16)
        # linear1: (bm, in) @ (in, hid_p) -> f32 accumulation on the MXU.
        h = jnp.dot(x, w1, preferred_element_type=jnp.float32)
        # Bias add + ReLU in f32 on the VPU.
        h = jnp.maximum(h + b1_ref[...].astype(jnp.float32), 0.0)

        w2 = w2_ref[...]
        if use_bf16:
            h2 = h.astype(jnp.bfloat16)
            w2 = w2.astype(jnp.bfloat16)
        elif w2.dtype != jnp.float32:
            h2 = h.astype(w2.dtype)  # mixed-precision MXU operands must match
        else:
            h2 = h                   # f32 weights -> no precision loss
        # linear2: (bm, hid_p) @ (hid_p, nc_p).
        o = jnp.dot(h2, w2, preferred_element_type=jnp.float32)
        out_ref[...] = (o + b2_ref[...].astype(jnp.float32)).astype(out_ref.dtype)

    return mlp_kernel


def prepare_params(w1, b1, w2, b2):
    """Pad the parameters once at init (hidden / num_classes lane-padded to 128)."""
    in_dim, hidden = w1.shape
    num_classes = w2.shape[1]
    hid_p = _round_up(hidden, LANE)
    nc_p = _round_up(num_classes, LANE)
    return dict(
        w1=_pad_to(w1, (in_dim, hid_p)),                       # K stays logical
        b1=_pad_to(b1.reshape(1, hidden), (1, hid_p)),
        w2=_pad_to(w2, (hid_p, nc_p)),
        b2=_pad_to(b2.reshape(1, num_classes), (1, nc_p)),
        in_dim=in_dim, hidden=hidden, num_classes=num_classes,
    )


def _build_call(kernel, *, bm, grid_n, in_dim, hid_p, nc_p, b_p, out_dtype,
                vmem_limit, cost, use_buffered):
    res_kw = {"pipeline_mode": pl.Buffered(1)} if use_buffered else {}

    def resident(shape):
        return pl.BlockSpec(shape, lambda i: (0,) * len(shape), **res_kw)

    return pl.pallas_call(
        kernel,
        out_shape=jax.ShapeDtypeStruct((b_p, nc_p), out_dtype),
        grid_spec=pltpu.PrefetchScalarGridSpec(
            num_scalar_prefetch=0,
            grid=(grid_n,),
            in_specs=[
                pl.BlockSpec((bm, in_dim), lambda i: (i, 0)),   # x tile (streamed)
                resident((in_dim, hid_p)),                      # W1 (resident)
                resident((1, hid_p)),                           # b1 (resident)
                resident((hid_p, nc_p)),                        # W2 (resident)
                resident((1, nc_p)),                            # b2 (resident)
            ],
            out_specs=pl.BlockSpec((bm, nc_p), lambda i: (i, 0)),  # lane-dense out
        ),
        compiler_params=pltpu.CompilerParams(
            dimension_semantics=("parallel",),
            vmem_limit_bytes=int(vmem_limit),
        ),
        cost_estimate=cost,
    )


def neural_net2_forward(x, params, *, bm=None, use_bf16_matmul=False):
    """x: (B, input_size); params from prepare_params(). Returns (B, num_classes)."""
    B, in_dim = x.shape
    assert in_dim == params["in_dim"], "input feature dim mismatch"
    w1_p, b1_p, w2_p, b2_p = params["w1"], params["b1"], params["w2"], params["b2"]
    hid_p = w1_p.shape[1]
    nc_p = w2_p.shape[1]
    num_classes = params["num_classes"]

    x_item = jnp.dtype(x.dtype).itemsize
    w_item = jnp.dtype(w1_p.dtype).itemsize
    # dtype-aware sublane multiple: bf16 packs 2 rows/sublane, int8/fp8 pack 4.
    sub = {4: 8, 2: 16, 1: 32}.get(x_item, 8)

    vmem_cap, num_tc = _chip_params()
    budget = int(0.70 * vmem_cap)

    # Single-buffered resident weight footprint (Buffered(1)).
    weight_bytes = (w1_p.size + b1_p.size + w2_p.size + b2_p.size) * w_item
    # Per-batch-row VMEM: double-buffered x/out tiles + f32 intermediates
    # (the (bm, hid_p) activation and the pre-cast (bm, nc_p) output).
    per_row = 2 * in_dim * x_item + 2 * nc_p * x_item + 4 * hid_p + 4 * nc_p
    avail = max(budget - weight_bytes, sub * per_row)
    bm_cap = max(sub, min(1024, (avail // per_row) // sub * sub))
    # TODO(synk): if weight_bytes alone exceeds the VMEM budget (very large
    # hidden dims on v7x), a K-tiled grid with an f32 accumulator scratch is
    # needed; not required at these layer sizes.

    if bm is None:
        bm, grid_n, b_p = _pick_batch_tile(B, sub, num_tc, bm_cap)
    else:
        assert bm % sub == 0, f"bm must be a multiple of {sub} for {x.dtype}"
        grid_n = _cdiv(B, bm)
        b_p = grid_n * bm

    # Only the batch dim is zero-padded (and only when B % bm != 0); the
    # contraction dim keeps its logical extent, so x is not re-materialized
    # in HBM in the common case.
    x_p = _pad_to(x, (b_p, in_dim))

    vmem_needed = 2 * weight_bytes + bm * per_row  # 2x weights: covers fallback buffering
    vmem_limit = min(int(0.75 * vmem_cap), max(32 * 1024 * 1024, 2 * vmem_needed))

    cost = pl.CostEstimate(
        flops=2 * b_p * (in_dim * hid_p + hid_p * nc_p),
        transcendentals=0,
        bytes_accessed=int(x_p.size * x_item + weight_bytes + b_p * nc_p * x_item),
    )

    kernel = _make_kernel(bool(use_bf16_matmul))
    args = (x_p, w1_p, b1_p, w2_p, b2_p)
    common = dict(bm=bm, grid_n=grid_n, in_dim=in_dim, hid_p=hid_p, nc_p=nc_p,
                  b_p=b_p, out_dtype=x.dtype, vmem_limit=vmem_limit, cost=cost)
    try:
        out_padded = _build_call(kernel, use_buffered=True, **common)(*args)
    except Exception:
        # Fallback for jax versions that reject pipeline_mode=pl.Buffered(1);
        # identical numerics, default double-buffered resident weights.
        out_padded = _build_call(kernel, use_buffered=False, **common)(*args)

    return out_padded[:B, :num_classes]


def reference_forward(x, w1, b1, w2, b2):
    h = jnp.maximum(x @ w1 + b1, 0.0)
    return h @ w2 + b2


if __name__ == "__main__":
    # Small shapes consistent with NeuralNet2(input_size, hidden_size, num_classes).
    B, input_size, hidden_size, num_classes = 8, 32, 64, 16

    key = jax.random.PRNGKey(0)
    kx, kw1, kb1, kw2, kb2, kx2 = jax.random.split(key, 6)

    bound1 = 1.0 / (input_size ** 0.5)
    bound2 = 1.0 / (hidden_size ** 0.5)
    x = jax.random.normal(kx, (B, input_size), dtype=jnp.float32)
    w1 = jax.random.uniform(kw1, (input_size, hidden_size), jnp.float32, -bound1, bound1)
    b1 = jax.random.uniform(kb1, (hidden_size,), jnp.float32, -bound1, bound1)
    w2 = jax.random.uniform(kw2, (hidden_size, num_classes), jnp.float32, -bound2, bound2)
    b2 = jax.random.uniform(kb2, (num_classes,), jnp.float32, -bound2, bound2)

    params = prepare_params(w1, b1, w2, b2)  # pad weights once, not per call

    out = jax.block_until_ready(neural_net2_forward(x, params))
    ref = reference_forward(x, w1, b1, w2, b2)
    assert out.shape == (B, num_classes)
    assert jnp.allclose(out, ref, atol=1e-5, rtol=1e-5)

    # Awkward batch size exercises the grid-count-first tiling / batch padding.
    x2 = jax.random.normal(kx2, (20, input_size), dtype=jnp.float32)
    out2 = jax.block_until_ready(neural_net2_forward(x2, params))
    ref2 = reference_forward(x2, w1, b1, w2, b2)
    assert out2.shape == (20, num_classes)
    assert jnp.allclose(out2, ref2, atol=1e-5, rtol=1e-5)

    print("KERNEL_OK")
</pallas_src>

<mosaic_0001>
module attributes {stable_mosaic.version = 11 : i64} {
  func.func @mlp_kernel(%arg0: i32, %arg1: memref<8x32xf32, #tpu.memory_space<vmem>>, %arg2: memref<32x128xf32, #tpu.memory_space<vmem>>, %arg3: memref<1x128xf32, #tpu.memory_space<vmem>>, %arg4: memref<128x128xf32, #tpu.memory_space<vmem>>, %arg5: memref<1x128xf32, #tpu.memory_space<vmem>>, %arg6: memref<8x128xf32, #tpu.memory_space<vmem>>) attributes {dimension_semantics = [#tpu.dimension_semantics<parallel>], iteration_bounds = array<i64: 1>, scalar_prefetch = 0 : i64, scratch_operands = 0 : i64, tpu.core_type = #tpu.core_type<tc>, window_params = [{transform_indices = @transform_0, window_bounds = array<i64: 8, 32>}, {pipeline_mode = #tpu.pipeline_mode<synchronous>, transform_indices = @transform_1, window_bounds = array<i64: 32, 128>}, {pipeline_mode = #tpu.pipeline_mode<synchronous>, transform_indices = @transform_2, window_bounds = array<i64: 1, 128>}, {pipeline_mode = #tpu.pipeline_mode<synchronous>, transform_indices = @transform_3, window_bounds = array<i64: 128, 128>}, {pipeline_mode = #tpu.pipeline_mode<synchronous>, transform_indices = @transform_4, window_bounds = array<i64: 1, 128>}, {transform_indices = @transform_5, window_bounds = array<i64: 8, 128>}]} {
    %c0 = arith.constant 0 : index
    %c0_0 = arith.constant 0 : index
    %0 = vector.load %arg1[%c0, %c0_0] : memref<8x32xf32, #tpu.memory_space<vmem>>, vector<8x32xf32>
    %c0_1 = arith.constant 0 : index
    %c0_2 = arith.constant 0 : index
    %1 = vector.load %arg2[%c0_1, %c0_2] : memref<32x128xf32, #tpu.memory_space<vmem>>, vector<32x128xf32>
    %cst = arith.constant dense<0.000000e+00> : vector<8x128xf32>
    %2 = tpu.matmul %0, %1, %cst {dimension_numbers = #tpu.dot_dimension_numbers<[1], [0], [0], [1], [0, 0, 1, 1], [], []>} : vector<8x32xf32>, vector<32x128xf32>, vector<8x128xf32> -> vector<8x128xf32>
    %c0_3 = arith.constant 0 : index
    %c0_4 = arith.constant 0 : index
    %3 = vector.load %arg3[%c0_3, %c0_4] : memref<1x128xf32, #tpu.memory_space<vmem>>, vector<1x128xf32>
    %4 = vector.broadcast %3 : vector<1x128xf32> to vector<8x128xf32>
    %5 = arith.addf %2, %4 : vector<8x128xf32>
    %cst_5 = arith.constant 0.000000e+00 : f32
    %6 = vector.broadcast %cst_5 : f32 to vector<8x128xf32>
    %7 = arith.maximumf %5, %6 : vector<8x128xf32>
    %c0_6 = arith.constant 0 : index
    %c0_7 = arith.constant 0 : index
    %8 = vector.load %arg4[%c0_6, %c0_7] : memref<128x128xf32, #tpu.memory_space<vmem>>, vector<128x128xf32>
    %cst_8 = arith.constant dense<0.000000e+00> : vector<8x128xf32>
    %9 = tpu.matmul %7, %8, %cst_8 {dimension_numbers = #tpu.dot_dimension_numbers<[1], [0], [0], [1], [0, 0, 1, 1], [], []>} : vector<8x128xf32>, vector<128x128xf32>, vector<8x128xf32> -> vector<8x128xf32>
    %c0_9 = arith.constant 0 : index
    %c0_10 = arith.constant 0 : index
    %10 = vector.load %arg5[%c0_9, %c0_10] : memref<1x128xf32, #tpu.memory_space<vmem>>, vector<1x128xf32>
    %11 = vector.broadcast %10 : vector<1x128xf32> to vector<8x128xf32>
    %12 = arith.addf %9, %11 : vector<8x128xf32>
    %c0_11 = arith.constant 0 : index
    %c0_12 = arith.constant 0 : index
    %13 = vector.load %arg6[%c0_11, %c0_12] : memref<8x128xf32, #tpu.memory_space<vmem>>, vector<8x128xf32>
    tpu.vector_store %arg6[%c0_11, %c0_12], %12 {strides = array<i32>} : memref<8x128xf32, #tpu.memory_space<vmem>>, vector<8x128xf32>,
    return
  }
  func.func @transform_0(%arg0: i32) -> (i32, i32) {
    %c0_i32 = arith.constant 0 : i32
    %c0_i32_0 = arith.constant 0 : i32
    return %arg0, %c0_i32 : i32, i32
  }
  func.func @transform_1(%arg0: i32) -> (i32, i32) {
    %c0_i32 = arith.constant 0 : i32
    %c0_i32_0 = arith.constant 0 : i32
    %c0_i32_1 = arith.constant 0 : i32
    return %c0_i32, %c0_i32_0 : i32, i32
  }
  func.func @transform_2(%arg0: i32) -> (i32, i32) {
    %c0_i32 = arith.constant 0 : i32
    %c0_i32_0 = arith.constant 0 : i32
    %c0_i32_1 = arith.constant 0 : i32
    return %c0_i32, %c0_i32_0 : i32, i32
  }
  func.func @transform_3(%arg0: i32) -> (i32, i32) {
    %c0_i32 = arith.constant 0 : i32
    %c0_i32_0 = arith.constant 0 : i32
    %c0_i32_1 = arith.constant 0 : i32
    return %c0_i32, %c0_i32_0 : i32, i32
  }
  func.func @transform_4(%arg0: i32) -> (i32, i32) {
    %c0_i32 = arith.constant 0 : i32
    %c0_i32_0 = arith.constant 0 : i32
    %c0_i32_1 = arith.constant 0 : i32
    return %c0_i32, %c0_i32_0 : i32, i32
  }
  func.func @transform_5(%arg0: i32) -> (i32, i32) {
    %c0_i32 = arith.constant 0 : i32
    %c0_i32_0 = arith.constant 0 : i32
    return %arg0, %c0_i32 : i32, i32
  }
}

module attributes {stable_mosaic.version = 11 : i64} {
  func.func @mlp_kernel(%arg0: i32, %arg1: memref<8x32xf32, #tpu.memory_space<vmem>>, %arg2: memref<32x128xf32, #tpu.memory_space<vmem>>, %arg3: memref<1x128xf32, #tpu.memory_space<vmem>>, %arg4: memref<128x128xf32, #tpu.memory_space<vmem>>, %arg5: memref<1x128xf32, #tpu.memory_space<vmem>>, %arg6: memref<8x128xf32, #tpu.memory_space<vmem>>) attributes {dimension_semantics = [#tpu.dimension_semantics<parallel>], iteration_bounds = array<i64: 1>, scalar_prefetch = 0 : i64, scratch_operands = 0 : i64, tpu.core_type = #tpu.core_type<tc>, window_params = [{transform_indices = @transform_0, window_bounds = array<i64: 8, 32>}, {pipeline_mode = #tpu.pipeline_mode<synchronous>, transform_indices = @transform_1, window_bounds = array<i64: 32, 128>}, {pipeline_mode = #tpu.pipeline_mode<synchronous>, transform_indices = @transform_2, window_bounds = array<i64: 1, 128>}, {pipeline_mode = #tpu.pipeline_mode<synchronous>, transform_indices = @transform_3, window_bounds = array<i64: 128, 128>}, {pipeline_mode = #tpu.pipeline_mode<synchronous>, transform_indices = @transform_4, window_bounds = array<i64: 1, 128>}, {transform_indices = @transform_5, window_bounds = array<i64: 8, 128>}]} {
    %c0 = arith.constant 0 : index
    %c0_0 = arith.constant 0 : index
    %0 = vector.load %arg1[%c0, %c0_0] : memref<8x32xf32, #tpu.memory_space<vmem>>, vector<8x32xf32>
    %c0_1 = arith.constant 0 : index
    %c0_2 = arith.constant 0 : index
    %1 = vector.load %arg2[%c0_1, %c0_2] : memref<32x128xf32, #tpu.memory_space<vmem>>, vector<32x128xf32>
    %cst = arith.constant dense<0.000000e+00> : vector<8x128xf32>
    %2 = tpu.matmul %0, %1, %cst {dimension_numbers = #tpu.dot_dimension_numbers<[1], [0], [0], [1], [0, 0, 1, 1], [], []>} : vector<8x32xf32>, vector<32x128xf32>, vector<8x128xf32> -> vector<8x128xf32>
    %c0_3 = arith.constant 0 : index
    %c0_4 = arith.constant 0 : index
    %3 = vector.load %arg3[%c0_3, %c0_4] : memref<1x128xf32, #tpu.memory_space<vmem>>, vector<1x128xf32>
    %4 = vector.broadcast %3 : vector<1x128xf32> to vector<8x128xf32>
    %5 = arith.addf %2, %4 : vector<8x128xf32>
    %cst_5 = arith.constant 0.000000e+00 : f32
    %6 = vector.broadcast %cst_5 : f32 to vector<8x128xf32>
    %7 = arith.maximumf %5, %6 : vector<8x128xf32>
    %c0_6 = arith.constant 0 : index
    %c0_7 = arith.constant 0 : index
    %8 = vector.load %arg4[%c0_6, %c0_7] : memref<128x128xf32, #tpu.memory_space<vmem>>, vector<128x128xf32>
    %cst_8 = arith.constant dense<0.000000e+00> : vector<8x128xf32>
    %9 = tpu.matmul %7, %8, %cst_8 {dimension_numbers = #tpu.dot_dimension_numbers<[1], [0], [0], [1], [0, 0, 1, 1], [], []>} : vector<8x128xf32>, vector<128x128xf32>, vector<8x128xf32> -> vector<8x128xf32>
    %c0_9 = arith.constant 0 : index
    %c0_10 = arith.constant 0 : index
    %10 = vector.load %arg5[%c0_9, %c0_10] : memref<1x128xf32, #tpu.memory_space<vmem>>, vector<1x128xf32>
    %11 = vector.broadcast %10 : vector<1x128xf32> to vector<8x128xf32>
    %12 = arith.addf %9, %11 : vector<8x128xf32>
    %c0_11 = arith.constant 0 : index
    %c0_12 = arith.constant 0 : index
    %13 = vector.load %arg6[%c0_11, %c0_12] : memref<8x128xf32, #tpu.memory_space<vmem>>, vector<8x128xf32>
    tpu.vector_store %arg6[%c0_11, %c0_12], %12 {strides = array<i32>} : memref<8x128xf32, #tpu.memory_space<vmem>>, vector<8x128xf32>,
    return
  }
  func.func @transform_0(%arg0: i32) -> (i32, i32) {
    %c0_i32 = arith.constant 0 : i32
    %c0_i32_0 = arith.constant 0 : i32
    return %arg0, %c0_i32 : i32, i32
  }
  func.func @transform_1(%arg0: i32) -> (i32, i32) {
    %c0_i32 = arith.constant 0 : i32
    %c0_i32_0 = arith.constant 0 : i32
    %c0_i32_1 = arith.constant 0 : i32
    return %c0_i32, %c0_i32_0 : i32, i32
  }
  func.func @transform_2(%arg0: i32) -> (i32, i32) {
    %c0_i32 = arith.constant 0 : i32
    %c0_i32_0 = arith.constant 0 : i32
    %c0_i32_1 = arith.constant 0 : i32
    return %c0_i32, %c0_i32_0 : i32, i32
  }
  func.func @transform_3(%arg0: i32) -> (i32, i32) {
    %c0_i32 = arith.constant 0 : i32
    %c0_i32_0 = arith.constant 0 : i32
    %c0_i32_1 = arith.constant 0 : i32
    return %c0_i32, %c0_i32_0 : i32, i32
  }
  func.func @transform_4(%arg0: i32) -> (i32, i32) {
    %c0_i32 = arith.constant 0 : i32
    %c0_i32_0 = arith.constant 0 : i32
    %c0_i32_1 = arith.constant 0 : i32
    return %c0_i32, %c0_i32_0 : i32, i32
  }
  func.func @transform_5(%arg0: i32) -> (i32, i32) {
    %c0_i32 = arith.constant 0 : i32
    %c0_i32_0 = arith.constant 0 : i32
    return %arg0, %c0_i32 : i32, i32
  }
}

</mosaic_0001>

<llo_original>
// kernel: tpu_custom_call.1
$region0: #{tpu_custom_call.1}
  #allocation0 [shape = 'u32[]', space=smem, size = 0x4, offset = 0x4, fixed_abs, tag = 'smem constant byte address 0x4 - core index']
  #allocation1 [shape = 'u32[72,128]{1,0:T(1,128)}', space=vmem, size = 0x9000, scoped, tag = 'internal scratch']
  %s0 = inlined_call_operand.hbm [shape: f32[8,32], index: 0, kind: input, shape index: {}]
  %s1 = inlined_call_operand.hbm [shape: f32[32,128], index: 1, kind: input, shape index: {}]
  %s2 = inlined_call_operand.vmem [shape: f32[1,128], index: 2, kind: input, shape index: {}]
  %s3 = inlined_call_operand.hbm [shape: f32[128,128], index: 3, kind: input, shape index: {}]
  %s4 = inlined_call_operand.vmem [shape: f32[1,128], index: 4, kind: input, shape index: {}]
  %s5 = inlined_call_operand.hbm [shape: f32[8,128], index: 5, kind: output, shape index: {}]
  %s6 = sld [smem:[#allocation0]]
  $region42: #{tpu_custom_call.1} parent=0
    _
  %s8 = ssub.s32 1, %s6
  %s9 = scalar_select 0, %s8, %s6
  $region1: #{tpu_custom_call.1} parent=0
    #allocation2 [shape = 'u8[4096]{0}', space=vmem, size = 0x1000, scoped, tag = 'input window, operand 0, single buffered']
    #allocation3 [shape = 's32[1]{0}', space=sflag, size = 0x4, scoped, tag = 'scoped memory for tpu_custom_call.1']
    #allocation4 [shape = 's32[1]{0}', space=sflag, size = 0x4, scoped, tag = 'scoped memory for tpu_custom_call.1']
    #allocation5 [shape = 'u8[16384]{0}', space=vmem, size = 0x4000, scoped, tag = 'input window, operand 1, single buffered']
    #allocation6 [shape = 's32[1]{0}', space=sflag, size = 0x4, scoped, tag = 'scoped memory for tpu_custom_call.1']
    #allocation7 [shape = 'u8[65536]{0}', space=vmem, size = 0x10000, scoped, tag = 'input window, operand 3, single buffered']
    #allocation8 [shape = 'u8[4096]{0}', space=vmem, size = 0x1000, scoped, tag = 'output window, operand 0, single buffered']
    %10 = vsyncpa [#allocation3], 0
    %11 = vsyncpa [#allocation6], 0
    %12 = vsyncpa [#allocation4], 0
    // Predicated region
    $region2: #{tpu_custom_call.1} parent=1 // pred_check
      _
    $region3: #{tpu_custom_call.1} parent=1 // pred_check_branch
      %14 = sbr.rel (0) target = $region5
    $region4: #{tpu_custom_call.1} parent=1 // pred_region
      %16 = vsyncadd [#allocation3], 0
      %s18 = sshll.u32 %s0, 4
      %s19 = int_to_ptr.hbm [resolvable:$true] %s18
      %s20 = sshll.u32 [#allocation2], 4
      %s21 = int_to_ptr.vmem [resolvable:$true] %s20
      %23 = dma.hbm_to_vmem [thread:$0]  %s19, 128, %s21, [#allocation3]
    $region5: #{tpu_custom_call.1} parent=1 // pred_fallthru
      _
    // Predicated region
    $region6: #{tpu_custom_call.1} parent=1 // pred_check
      _
    $region7: #{tpu_custom_call.1} parent=1 // pred_check_branch
      %25 = sbr.rel (0) target = $region9
    $region8: #{tpu_custom_call.1} parent=1 // pred_region
      %27 = vsyncadd [#allocation6], 0
      %s28 = sshll.u32 %s1, 4
      %s29 = int_to_ptr.hbm [resolvable:$true] %s28
      %s30 = sshll.u32 [#allocation5], 4
      %s31 = int_to_ptr.vmem [resolvable:$true] %s30
      %36 = dma.hbm_to_vmem [thread:$0]  %s29, 512, %s31, [#allocation6], 128, 128, 8
    $region9: #{tpu_custom_call.1} parent=1 // pred_fallthru
      _
    // Predicated region
    $region10: #{tpu_custom_call.1} parent=1 // pred_check
      _
    $region11: #{tpu_custom_call.1} parent=1 // pred_check_branch
      %38 = sbr.rel (0) target = $region13
    $region12: #{tpu_custom_call.1} parent=1 // pred_region
      _
    $region13: #{tpu_custom_call.1} parent=1 // pred_fallthru
      _
    // Predicated region
    $region14: #{tpu_custom_call.1} parent=1 // pred_check
      _
    $region15: #{tpu_custom_call.1} parent=1 // pred_check_branch
      %40 = sbr.rel (0) target = $region17
    $region16: #{tpu_custom_call.1} parent=1 // pred_region
      %42 = vsyncadd [#allocation6], 0
      %s43 = sshll.u32 %s3, 4
      %s44 = int_to_ptr.hbm [resolvable:$true] %s43
      %s45 = sshll.u32 [#allocation7], 4
      %s46 = int_to_ptr.vmem [resolvable:$true] %s45
      %51 = dma.hbm_to_vmem [thread:$0]  %s44, 2048, %s46, [#allocation6], 128, 128, 8
    $region17: #{tpu_custom_call.1} parent=1 // pred_fallthru
      _
    // Predicated region
    $region18: #{tpu_custom_call.1} parent=1 // pred_check
      _
    $region19: #{tpu_custom_call.1} parent=1 // pred_check_branch
      %53 = sbr.rel (0) target = $region21
    $region20: #{tpu_custom_call.1} parent=1 // pred_region
      _
    $region21: #{tpu_custom_call.1} parent=1 // pred_fallthru
      _
    // Predicated region
    $region22: #{tpu_custom_call.1} parent=1 // pred_check
      _
    $region23: #{tpu_custom_call.1} parent=1 // pred_check_branch
      %55 = sbr.rel (0) target = $region25
    $region24: #{tpu_custom_call.1} parent=1 // pred_region
      %57 = dma.done [#allocation3], 128
    $region25: #{tpu_custom_call.1} parent=1 // pred_fallthru
      _
    // Predicated region
    $region26: #{tpu_custom_call.1} parent=1 // pred_check
      _
    $region27: #{tpu_custom_call.1} parent=1 // pred_check_branch
      %59 = sbr.rel (0) target = $region29
    $region28: #{tpu_custom_call.1} parent=1 // pred_region
      %61 = dma.done [#allocation6], 512
    $region29: #{tpu_custom_call.1} parent=1 // pred_fallthru
      _
    // Predicated region
    $region30: #{tpu_custom_call.1} parent=1 // pred_check
      _
    $region31: #{tpu_custom_call.1} parent=1 // pred_check_branch
      %63 = sbr.rel (0) target = $region33
    $region32: #{tpu_custom_call.1} parent=1 // pred_region
      %65 = dma.done [#allocation6], 2048
    $region33: #{tpu_custom_call.1} parent=1 // pred_fallthru
      _
    %v66 = vld [vmem:[#allocation2] sm:$0xff]
    %v67 = vld [vmem:[#allocation5] sm:$0xff]
    %v68 = vld [vmem:[#allocation5 + $0x8] sm:$0xff]
    %v69 = vld [vmem:[#allocation5 + $0x10] sm:$0xff]
    %v70 = vld [vmem:[#allocation5 + $0x18] sm:$0xff]
    %v71 = vld [vmem:[%s2] sm:$0x1]
    %v73 = vperm.slane %v71, 0
    %vm75 = vcmask 261120
    %v77 = vsel %vm75, %v66, 0
    %79 = vmatpush.msra.mxu0 0.0
    %80 = vmatpush.msra.mxu0 0.0
    %81 = vmatpush.msra.mxu0 0.0
    %82 = vmatpush.msra.mxu0 0.0
    %83 = vmatpush.msra.mxu0 0.0
    %84 = vmatpush.msra.mxu0 0.0
    %85 = vmatpush.msra.mxu0 0.0
    %86 = vmatpush.msra.mxu0 0.0
    %87 = vmatpush.msra.mxu0 0.0
    %88 = vmatpush.msra.mxu0 0.0
    %89 = vmatpush.msra.mxu0 0.0
    %90 = vmatpush.msra.mxu0 0.0
    %91 = vmatpush.msra.mxu0 %v70
    %92 = vmatpush.msra.mxu0 %v69
    %93 = vmatpush.msra.mxu0 %v68
    %94 = vmatpush.msra.mxu0 %v67
    %95 = vmatmul.f32.gmra.mxu0 %v77
    %v96 = vpop.f32.mrf.mxu0
    %v97 = vadd.f32 %v73, %v96
    %98 = vdwg.mxu0
    %v99 = vmax.f32 %v97, 0.0
    %v100 = vld [vmem:[#allocation7] sm:$0xff]
    %v101 = vld [vmem:[#allocation7 + $0x8] sm:$0xff]
    %v102 = vld [vmem:[#allocation7 + $0x10] sm:$0xff]
    %v103 = vld [vmem:[#allocation7 + $0x18] sm:$0xff]
    %v104 = vld [vmem:[#allocation7 + $0x20] sm:$0xff]
    %v105 = vld [vmem:[#allocation7 + $0x28] sm:$0xff]
    %v106 = vld [vmem:[#allocation7 + $0x30] sm:$0xff]
    %v107 = vld [vmem:[#allocation7 + $0x38] sm:$0xff]
    %v108 = vld [vmem:[#allocation7 + $0x40] sm:$0xff]
    %v109 = vld [vmem:[#allocation7 + $0x48] sm:$0xff]
    %v110 = vld [vmem:[#allocation7 + $0x50] sm:$0xff]
    %v111 = vld [vmem:[#allocation7 + $0x58] sm:$0xff]
    %v112 = vld [vmem:[#allocation7 + $0x60] sm:$0xff]
    %v113 = vld [vmem:[#allocation7 + $0x68] sm:$0xff]
    %v114 = vld [vmem:[#allocation7 + $0x70] sm:$0xff]
    %v115 = vld [vmem:[#allocation7 + $0x78] sm:$0xff]
    %v116 = vld [vmem:[%s4] sm:$0x1]
    %v118 = vperm.slane %v116, 0
    %120 = vmatpush.msra.mxu0 %v115
    %121 = vmatpush.msra.mxu0 %v114
    %122 = vmatpush.msra.mxu0 %v113
    %123 = vmatpush.msra.mxu0 %v112
    %124 = vmatpush.msra.mxu0 %v111
    %125 = vmatpush.msra.mxu0 %v110
    %126 = vmatpush.msra.mxu0 %v109
    %127 = vmatpush.msra.mxu0 %v108
    %128 = vmatpush.msra.mxu0 %v107
    %129 = vmatpush.msra.mxu0 %v106
    %130 = vmatpush.msra.mxu0 %v105
    %131 = vmatpush.msra.mxu0 %v104
    %132 = vmatpush.msra.mxu0 %v103
    %133 = vmatpush.msra.mxu0 %v102
    %134 = vmatpush.msra.mxu0 %v101
    %135 = vmatpush.msra.mxu0 %v100
    %136 = vmatmul.f32.gmra.mxu0 %v99
    %v137 = vpop.f32.mrf.mxu0
    %v138 = vadd.f32 %v118, %v137
    %139 = vdwg.mxu0
    %140 = vst [vmem:[#allocation8] sm:$0xff] %v138
    // Predicated region
    $region34: #{tpu_custom_call.1} parent=1 // pred_check
      _
    $region35: #{tpu_custom_call.1} parent=1 // pred_check_branch
      %142 = sbr.rel (0) target = $region37
    $region36: #{tpu_custom_call.1} parent=1 // pred_region
      %144 = vsyncadd [#allocation4], 0
      %s146 = sshll.u32 [#allocation8], 4
      %s147 = int_to_ptr.vmem [resolvable:$true] %s146
      %s148 = sshll.u32 %s5, 4
      %s149 = int_to_ptr.hbm [resolvable:$true] %s148
      %151 = dma.vmem_to_hbm [thread:$0]  %s147, 128, %s149, [#allocation4]
    $region37: #{tpu_custom_call.1} parent=1 // pred_fallthru
      _
    // Predicated region
    $region38: #{tpu_custom_call.1} parent=1 // pred_check
      _
    $region39: #{tpu_custom_call.1} parent=1 // pred_check_branch
      %153 = sbr.rel (0) target = $region41
    $region40: #{tpu_custom_call.1} parent=1 // pred_region
      %155 = dma.done [#allocation4], 128
    $region41: #{tpu_custom_call.1} parent=1 // pred_fallthru
      _
    %156 = vsyncpa [#allocation3], 1
    %157 = vsyncpa [#allocation6], 1
    %158 = vsyncpa [#allocation4], 1

// kernel: tpu_custom_call.1
$region0: #{tpu_custom_call.1}
  #allocation0 [shape = 'u32[]', space=smem, size = 0x4, offset = 0x4, fixed_abs, tag = 'smem constant byte address 0x4 - core index']
  #allocation1 [shape = 'u32[72,128]{1,0:T(1,128)}', space=vmem, size = 0x9000, scoped, tag = 'internal scratch']
  %s0 = inlined_call_operand.hbm [shape: f32[8,32], index: 0, kind: input, shape index: {}]
  %s1 = inlined_call_operand.hbm [shape: f32[32,128], index: 1, kind: input, shape index: {}]
  %s2 = inlined_call_operand.vmem [shape: f32[1,128], index: 2, kind: input, shape index: {}]
  %s3 = inlined_call_operand.hbm [shape: f32[128,128], index: 3, kind: input, shape index: {}]
  %s4 = inlined_call_operand.vmem [shape: f32[1,128], index: 4, kind: input, shape index: {}]
  %s5 = inlined_call_operand.hbm [shape: f32[8,128], index: 5, kind: output, shape index: {}]
  %s6 = sld [smem:[#allocation0]]
  $region42: #{tpu_custom_call.1} parent=0
    _
  %s8 = ssub.s32 1, %s6
  %s9 = scalar_select 0, %s8, %s6
  $region1: #{tpu_custom_call.1} parent=0
    #allocation2 [shape = 'u8[4096]{0}', space=vmem, size = 0x1000, scoped, tag = 'input window, operand 0, single buffered']
    #allocation3 [shape = 's32[1]{0}', space=sflag, size = 0x4, scoped, tag = 'scoped memory for tpu_custom_call.1']
    #allocation4 [shape = 's32[1]{0}', space=sflag, size = 0x4, scoped, tag = 'scoped memory for tpu_custom_call.1']
    #allocation5 [shape = 'u8[16384]{0}', space=vmem, size = 0x4000, scoped, tag = 'input window, operand 1, single buffered']
    #allocation6 [shape = 's32[1]{0}', space=sflag, size = 0x4, scoped, tag = 'scoped memory for tpu_custom_call.1']
    #allocation7 [shape = 'u8[65536]{0}', space=vmem, size = 0x10000, scoped, tag = 'input window, operand 3, single buffered']
    #allocation8 [shape = 'u8[4096]{0}', space=vmem, size = 0x1000, scoped, tag = 'output window, operand 0, single buffered']
    %10 = vsyncpa [#allocation3], 0
    %11 = vsyncpa [#allocation6], 0
    %12 = vsyncpa [#allocation4], 0
    // Predicated region
    $region2: #{tpu_custom_call.1} parent=1 // pred_check
      _
    $region3: #{tpu_custom_call.1} parent=1 // pred_check_branch
      %14 = sbr.rel (0) target = $region5
    $region4: #{tpu_custom_call.1} parent=1 // pred_region
      %16 = vsyncadd [#allocation3], 0
      %s18 = sshll.u32 %s0, 4
      %s19 = int_to_ptr.hbm [resolvable:$true] %s18
      %s20 = sshll.u32 [#allocation2], 4
      %s21 = int_to_ptr.vmem [resolvable:$true] %s20
      %23 = dma.hbm_to_vmem [thread:$0]  %s19, 128, %s21, [#allocation3]
    $region5: #{tpu_custom_call.1} parent=1 // pred_fallthru
      _
    // Predicated region
    $region6: #{tpu_custom_call.1} parent=1 // pred_check
      _
    $region7: #{tpu_custom_call.1} parent=1 // pred_check_branch
      %25 = sbr.rel (0) target = $region9
    $region8: #{tpu_custom_call.1} parent=1 // pred_region
      %27 = vsyncadd [#allocation6], 0
      %s28 = sshll.u32 %s1, 4
      %s29 = int_to_ptr.hbm [resolvable:$true] %s28
      %s30 = sshll.u32 [#allocation5], 4
      %s31 = int_to_ptr.vmem [resolvable:$true] %s30
      %36 = dma.hbm_to_vmem [thread:$0]  %s29, 512, %s31, [#allocation6], 128, 128, 8
    $region9: #{tpu_custom_call.1} parent=1 // pred_fallthru
      _
    // Predicated region
    $region10: #{tpu_custom_call.1} parent=1 // pred_check
      _
    $region11: #{tpu_custom_call.1} parent=1 // pred_check_branch
      %38 = sbr.rel (0) target = $region13
    $region12: #{tpu_custom_call.1} parent=1 // pred_region
      _
    $region13: #{tpu_custom_call.1} parent=1 // pred_fallthru
      _
    // Predicated region
    $region14: #{tpu_custom_call.1} parent=1 // pred_check
      _
    $region15: #{tpu_custom_call.1} parent=1 // pred_check_branch
      %40 = sbr.rel (0) target = $region17
    $region16: #{tpu_custom_call.1} parent=1 // pred_region
      %42 = vsyncadd [#allocation6], 0
      %s43 = sshll.u32 %s3, 4
      %s44 = int_to_ptr.hbm [resolvable:$true] %s43
      %s45 = sshll.u32 [#allocation7], 4
      %s46 = int_to_ptr.vmem [resolvable:$true] %s45
      %51 = dma.hbm_to_vmem [thread:$0]  %s44, 2048, %s46, [#allocation6], 128, 128, 8
    $region17: #{tpu_custom_call.1} parent=1 // pred_fallthru
      _
    // Predicated region
    $region18: #{tpu_custom_call.1} parent=1 // pred_check
      _
    $region19: #{tpu_custom_call.1} parent=1 // pred_check_branch
      %53 = sbr.rel (0) target = $region21
    $region20: #{tpu_custom_call.1} parent=1 // pred_region
      _
    $region21: #{tpu_custom_call.1} parent=1 // pred_fallthru
      _
    // Predicated region
    $region22: #{tpu_custom_call.1} parent=1 // pred_check
      _
    $region23: #{tpu_custom_call.1} parent=1 // pred_check_branch
      %55 = sbr.rel (0) target = $region25
    $region24: #{tpu_custom_call.1} parent=1 // pred_region
      %57 = dma.done [#allocation3], 128
    $region25: #{tpu_custom_call.1} parent=1 // pred_fallthru
      _
    // Predicated region
    $region26: #{tpu_custom_call.1} parent=1 // pred_check
      _
    $region27: #{tpu_custom_call.1} parent=1 // pred_check_branch
      %59 = sbr.rel (0) target = $region29
    $region28: #{tpu_custom_call.1} parent=1 // pred_region
      %61 = dma.done [#allocation6], 512
    $region29: #{tpu_custom_call.1} parent=1 // pred_fallthru
      _
    // Predicated region
    $region30: #{tpu_custom_call.1} parent=1 // pred_check
      _
    $region31: #{tpu_custom_call.1} parent=1 // pred_check_branch
      %63 = sbr.rel (0) target = $region33
    $region32: #{tpu_custom_call.1} parent=1 // pred_region
      %65 = dma.done [#allocation6], 2048
    $region33: #{tpu_custom_call.1} parent=1 // pred_fallthru
      _
    %v66 = vld [vmem:[#allocation2] sm:$0xff]
    %v67 = vld [vmem:[#allocation5] sm:$0xff]
    %v68 = vld [vmem:[#allocation5 + $0x8] sm:$0xff]
    %v69 = vld [vmem:[#allocation5 + $0x10] sm:$0xff]
    %v70 = vld [vmem:[#allocation5 + $0x18] sm:$0xff]
    %v71 = vld [vmem:[%s2] sm:$0x1]
    %v73 = vperm.slane %v71, 0
    %vm75 = vcmask 261120
    %v77 = vsel %vm75, %v66, 0
    %79 = vmatpush.msra.mxu0 0.0
    %80 = vmatpush.msra.mxu0 0.0
    %81 = vmatpush.msra.mxu0 0.0
    %82 = vmatpush.msra.mxu0 0.0
    %83 = vmatpush.msra.mxu0 0.0
    %84 = vmatpush.msra.mxu0 0.0
    %85 = vmatpush.msra.mxu0 0.0
    %86 = vmatpush.msra.mxu0 0.0
    %87 = vmatpush.msra.mxu0 0.0
    %88 = vmatpush.msra.mxu0 0.0
    %89 = vmatpush.msra.mxu0 0.0
    %90 = vmatpush.msra.mxu0 0.0
    %91 = vmatpush.msra.mxu0 %v70
    %92 = vmatpush.msra.mxu0 %v69
    %93 = vmatpush.msra.mxu0 %v68
    %94 = vmatpush.msra.mxu0 %v67
    %95 = vmatmul.f32.gmra.mxu0 %v77
    %v96 = vpop.f32.mrf.mxu0
    %v97 = vadd.f32 %v73, %v96
    %98 = vdwg.mxu0
    %v99 = vmax.f32 %v97, 0.0
    %v100 = vld [vmem:[#allocation7] sm:$0xff]
    %v101 = vld [vmem:[#allocation7 + $0x8] sm:$0xff]
    %v102 = vld [vmem:[#allocation7 + $0x10] sm:$0xff]
    %v103 = vld [vmem:[#allocation7 + $0x18] sm:$0xff]
    %v104 = vld [vmem:[#allocation7 + $0x20] sm:$0xff]
    %v105 = vld [vmem:[#allocation7 + $0x28] sm:$0xff]
    %v106 = vld [vmem:[#allocation7 + $0x30] sm:$0xff]
    %v107 = vld [vmem:[#allocation7 + $0x38] sm:$0xff]
    %v108 = vld [vmem:[#allocation7 + $0x40] sm:$0xff]
    %v109 = vld [vmem:[#allocation7 + $0x48] sm:$0xff]
    %v110 = vld [vmem:[#allocation7 + $0x50] sm:$0xff]
    %v111 = vld [vmem:[#allocation7 + $0x58] sm:$0xff]
    %v112 = vld [vmem:[#allocation7 + $0x60] sm:$0xff]
    %v113 = vld [vmem:[#allocation7 + $0x68] sm:$0xff]
    %v114 = vld [vmem:[#allocation7 + $0x70] sm:$0xff]
    %v115 = vld [vmem:[#allocation7 + $0x78] sm:$0xff]
    %v116 = vld [vmem:[%s4] sm:$0x1]
    %v118 = vperm.slane %v116, 0
    %120 = vmatpush.msra.mxu0 %v115
    %121 = vmatpush.msra.mxu0 %v114
    %122 = vmatpush.msra.mxu0 %v113
    %123 = vmatpush.msra.mxu0 %v112
    %124 = vmatpush.msra.mxu0 %v111
    %125 = vmatpush.msra.mxu0 %v110
    %126 = vmatpush.msra.mxu0 %v109
    %127 = vmatpush.msra.mxu0 %v108
    %128 = vmatpush.msra.mxu0 %v107
    %129 = vmatpush.msra.mxu0 %v106
    %130 = vmatpush.msra.mxu0 %v105
    %131 = vmatpush.msra.mxu0 %v104
    %132 = vmatpush.msra.mxu0 %v103
    %133 = vmatpush.msra.mxu0 %v102
    %134 = vmatpush.msra.mxu0 %v101
    %135 = vmatpush.msra.mxu0 %v100
    %136 = vmatmul.f32.gmra.mxu0 %v99
    %v137 = vpop.f32.mrf.mxu0
    %v138 = vadd.f32 %v118, %v137
    %139 = vdwg.mxu0
    %140 = vst [vmem:[#allocation8] sm:$0xff] %v138
    // Predicated region
    $region34: #{tpu_custom_call.1} parent=1 // pred_check
      _
    $region35: #{tpu_custom_call.1} parent=1 // pred_check_branch
      %142 = sbr.rel (0) target = $region37
    $region36: #{tpu_custom_call.1} parent=1 // pred_region
      %144 = vsyncadd [#allocation4], 0
      %s146 = sshll.u32 [#allocation8], 4
      %s147 = int_to_ptr.vmem [resolvable:$true] %s146
      %s148 = sshll.u32 %s5, 4
      %s149 = int_to_ptr.hbm [resolvable:$true] %s148
      %151 = dma.vmem_to_hbm [thread:$0]  %s147, 128, %s149, [#allocation4]
    $region37: #{tpu_custom_call.1} parent=1 // pred_fallthru
      _
    // Predicated region
    $region38: #{tpu_custom_call.1} parent=1 // pred_check
      _
    $region39: #{tpu_custom_call.1} parent=1 // pred_check_branch
      %153 = sbr.rel (0) target = $region41
    $region40: #{tpu_custom_call.1} parent=1 // pred_region
      %155 = dma.done [#allocation4], 128
    $region41: #{tpu_custom_call.1} parent=1 // pred_fallthru
      _
    %156 = vsyncpa [#allocation3], 1
    %157 = vsyncpa [#allocation6], 1
    %158 = vsyncpa [#allocation4], 1

</llo_original>
